<compile_context>
chip_gen: v6e
topology: v6e:2x2x1
jax: 0.10.0
libtpu: 0.0.40
codegen_flags: <defaults>
</compile_context>

<pallas_src>
import functools

import jax
import jax.numpy as jnp
from jax import lax
from jax.experimental import pallas as pl
from jax.experimental.pallas import tpu as pltpu

TEMP = 0.05
COS_EPS = 1e-8          # torch cosine_similarity default eps
_NEG_BIG = -1e30        # diagonal sentinel (exp() underflows to 0, same as torch's -2e13)


def _criterion_kernel(xr_ref, xc_ref, loss_ref, m_sc, l_sc, t_sc, *, tm, tn, inv_temp):
    i = pl.program_id(0)          # row-tile index ("parallel")
    j = pl.program_id(1)          # col-tile index ("arbitrary", reduction)

    @pl.when(j == 0)
    def _init():
        m_sc[...] = jnp.full_like(m_sc, _NEG_BIG)
        l_sc[...] = jnp.zeros_like(l_sc)
        t_sc[...] = jnp.zeros_like(t_sc)

    # ---- normalize rows (f32), cast to bf16 for the MXU --------------------------------
    xr = xr_ref[...].astype(jnp.float32)                                   # (tm, D)
    xc = xc_ref[...].astype(jnp.float32)                                   # (tn, D)
    inv_r = lax.rsqrt(jnp.maximum(jnp.sum(xr * xr, axis=-1, keepdims=True),
                                  COS_EPS * COS_EPS))
    inv_c = lax.rsqrt(jnp.maximum(jnp.sum(xc * xc, axis=-1, keepdims=True),
                                  COS_EPS * COS_EPS))
    xrn = (xr * inv_r).astype(jnp.bfloat16)
    xcn = (xc * inv_c).astype(jnp.bfloat16)

    # ---- cosine-similarity tile: contract on D for both operands (no transpose) --------
    sim = lax.dot_general(xrn, xcn,
                          dimension_numbers=(((1,), (1,)), ((), ())),
                          preferred_element_type=jnp.float32)              # (tm, tn)

    grow = i * tm + lax.broadcasted_iota(jnp.int32, (tm, tn), 0)
    gcol = j * tn + lax.broadcasted_iota(jnp.int32, (tm, tn), 1)

    # fused temperature scaling + diagonal mask
    logits = jnp.where(grow == gcol, _NEG_BIG, sim * inv_temp)             # (tm, tn)

    # ---- target (partner) logit: labels[i] = i ^ 1 --------------------------------------
    t_sc[...] += jnp.sum(jnp.where(gcol == (grow ^ 1), logits, 0.0),
                         axis=-1, keepdims=True)

    # ---- online logsumexp ----------------------------------------------------------------
    m_prev = m_sc[...]
    m_new = jnp.maximum(m_prev, jnp.max(logits, axis=-1, keepdims=True))
    alpha = jnp.exp(m_prev - m_new)
    l_sc[...] = alpha * l_sc[...] + jnp.sum(jnp.exp(logits - m_new),
                                            axis=-1, keepdims=True)
    m_sc[...] = m_new

    @pl.when(j == pl.num_programs(1) - 1)
    def _finalize():
        lse = m_sc[...] + jnp.log(l_sc[...])
        loss_ref[...] = lse - t_sc[...]


def _pick_tile(n, target):
    """Largest multiple of 8 <= target that divides n (or n itself)."""
    if n <= target or n <= 8:
        return n
    t = (min(target, n) // 8) * 8
    while t >= 8:
        if n % t == 0:
            return t
        t -= 8
    return n


def criterion_loss(x, *, row_tile=256, col_tile=512):
    """x: (N, D). Returns scalar f32 loss matching Criterion(temp=0.05)(x)."""
    x = jnp.asarray(x)
    n, d = x.shape
    tm = _pick_tile(n, row_tile)
    tn = _pick_tile(n, col_tile)
    grid = (n // tm, n // tn)

    kernel = functools.partial(_criterion_kernel, tm=tm, tn=tn, inv_temp=1.0 / TEMP)

    cost = pl.CostEstimate(
        flops=int(2 * n * n * d + 6 * n * n),
        transcendentals=int(n * n + 2 * n),
        bytes_accessed=int((grid[0] + grid[1]) * n * d * x.dtype.itemsize + n * 4),
    )

    per_row = pl.pallas_call(
        kernel,
        out_shape=jax.ShapeDtypeStruct((n, 1), jnp.float32),
        grid_spec=pltpu.PrefetchScalarGridSpec(
            num_scalar_prefetch=0,
            grid=grid,
            in_specs=[
                pl.BlockSpec((tm, d), lambda i, j: (i, 0)),   # row block of x
                pl.BlockSpec((tn, d), lambda i, j: (j, 0)),   # col block of x
            ],
            out_specs=pl.BlockSpec((tm, 1), lambda i, j: (i, 0)),
            scratch_shapes=[
                pltpu.VMEM((tm, 1), jnp.float32),   # running max
                pltpu.VMEM((tm, 1), jnp.float32),   # running exp-sum
                pltpu.VMEM((tm, 1), jnp.float32),   # target logit
            ],
        ),
        compiler_params=pltpu.CompilerParams(
            dimension_semantics=("parallel", "arbitrary"),
        ),
        cost_estimate=cost,
    )(x, x)

    return jnp.sum(per_row) / jnp.float32(n)


# ------------------------------ pure-JAX references ---------------------------------------
def _reference_loss_f32(x):
    # Full-precision mirror of the PyTorch module.
    x = x.astype(jnp.float32)
    n = x.shape[0]
    norms = jnp.sqrt(jnp.sum(x * x, axis=-1, keepdims=True))
    xn = x / jnp.maximum(norms, COS_EPS)
    sim = xn @ xn.T
    sim = sim - jnp.eye(n, dtype=jnp.float32) * 1e12
    sim = sim / TEMP
    labels = jnp.arange(n)
    labels = labels - labels % 2 * 2 + 1
    lse = jax.scipy.special.logsumexp(sim, axis=-1)
    tgt = sim[jnp.arange(n), labels]
    return jnp.mean(lse - tgt)


def _reference_loss_bf16(x):
    # Mirrors the kernel numerics (bf16 matmul operands, f32 accumulation).
    x = x.astype(jnp.float32)
    n = x.shape[0]
    inv = lax.rsqrt(jnp.maximum(jnp.sum(x * x, axis=-1, keepdims=True),
                                COS_EPS * COS_EPS))
    xn = (x * inv).astype(jnp.bfloat16)
    sim = jnp.dot(xn, xn.T, preferred_element_type=jnp.float32)
    sim = jnp.where(jnp.eye(n, dtype=bool), _NEG_BIG, sim * (1.0 / TEMP))
    labels = jnp.arange(n) ^ 1
    lse = jax.scipy.special.logsumexp(sim, axis=-1)
    tgt = sim[jnp.arange(n), labels]
    return jnp.mean(lse - tgt)


if __name__ == "__main__":
    key = jax.random.PRNGKey(0)

    # Small shape implied by the module: batch of 8 (4 positive pairs), hidden dim 32.
    N, D = 8, 32
    x = jax.random.normal(key, (N, D), dtype=jnp.float32)

    loss = criterion_loss(x)
    jax.block_until_ready(loss)

    ref_bf16 = _reference_loss_bf16(x)
    ref_f32 = _reference_loss_f32(x)
    assert jnp.allclose(loss, ref_bf16, atol=2e-2, rtol=2e-2), (loss, ref_bf16)
    assert jnp.allclose(loss, ref_f32, atol=1e-1, rtol=2e-2), (loss, ref_f32)

    # Exercise the multi-tile (online-softmax) path with a slightly larger batch.
    k2 = jax.random.PRNGKey(1)
    x2 = jax.random.normal(k2, (64, 128), dtype=jnp.float32)
    loss2 = criterion_loss(x2, row_tile=16, col_tile=32)   # grid (4, 2)
    jax.block_until_ready(loss2)
    assert jnp.allclose(loss2, _reference_loss_bf16(x2), atol=2e-2, rtol=2e-2)
    assert jnp.allclose(loss2, _reference_loss_f32(x2), atol=1e-1, rtol=2e-2)

    print("KERNEL_OK")
</pallas_src>

<mosaic_0001>
module attributes {stable_mosaic.version = 11 : i64} {
  func.func @_criterion_kernel(%arg0: i32, %arg1: i32, %arg2: memref<8x32xf32, #tpu.memory_space<vmem>>, %arg3: memref<8x32xf32, #tpu.memory_space<vmem>>, %arg4: memref<8x1xf32, #tpu.memory_space<vmem>>, %arg5: memref<8x1xf32, #tpu.memory_space<vmem>>, %arg6: memref<8x1xf32, #tpu.memory_space<vmem>>, %arg7: memref<8x1xf32, #tpu.memory_space<vmem>>) attributes {dimension_semantics = [#tpu.dimension_semantics<parallel>, #tpu.dimension_semantics<arbitrary>], iteration_bounds = array<i64: 1, 1>, scalar_prefetch = 0 : i64, scratch_operands = 3 : i64, tpu.core_type = #tpu.core_type<tc>, window_params = [{transform_indices = @transform_0, window_bounds = array<i64: 8, 32>}, {transform_indices = @transform_1, window_bounds = array<i64: 8, 32>}, {transform_indices = @transform_2, window_bounds = array<i64: 8, 1>}]} {
    %c0_i32 = arith.constant 0 : i32
    %0 = arith.cmpi eq, %arg1, %c0_i32 : i32
    %1 = arith.extui %0 : i1 to i32
    %c0_i32_0 = arith.constant 0 : i32
    %2 = arith.cmpi ne, %1, %c0_i32_0 : i32
    scf.if %2 {
      %cst_29 = arith.constant -1.000000e+30 : f32
      %66 = vector.broadcast %cst_29 : f32 to vector<8x1xf32>
      %c0_30 = arith.constant 0 : index
      %c0_31 = arith.constant 0 : index
      %67 = vector.load %arg5[%c0_30, %c0_31] : memref<8x1xf32, #tpu.memory_space<vmem>>, vector<8x1xf32>
      tpu.vector_store %arg5[%c0_30, %c0_31], %66 {strides = array<i32>} : memref<8x1xf32, #tpu.memory_space<vmem>>, vector<8x1xf32>,
      %cst_32 = arith.constant 0.000000e+00 : f32
      %68 = vector.broadcast %cst_32 : f32 to vector<8x1xf32>
      %c0_33 = arith.constant 0 : index
      %c0_34 = arith.constant 0 : index
      %69 = vector.load %arg6[%c0_33, %c0_34] : memref<8x1xf32, #tpu.memory_space<vmem>>, vector<8x1xf32>
      tpu.vector_store %arg6[%c0_33, %c0_34], %68 {strides = array<i32>} : memref<8x1xf32, #tpu.memory_space<vmem>>, vector<8x1xf32>,
      %cst_35 = arith.constant 0.000000e+00 : f32
      %70 = vector.broadcast %cst_35 : f32 to vector<8x1xf32>
      %c0_36 = arith.constant 0 : index
      %c0_37 = arith.constant 0 : index
      %71 = vector.load %arg7[%c0_36, %c0_37] : memref<8x1xf32, #tpu.memory_space<vmem>>, vector<8x1xf32>
      tpu.vector_store %arg7[%c0_36, %c0_37], %70 {strides = array<i32>} : memref<8x1xf32, #tpu.memory_space<vmem>>, vector<8x1xf32>,
    } else {
    }
    %c0 = arith.constant 0 : index
    %c0_1 = arith.constant 0 : index
    %3 = vector.load %arg2[%c0, %c0_1] : memref<8x32xf32, #tpu.memory_space<vmem>>, vector<8x32xf32>
    %c0_2 = arith.constant 0 : index
    %c0_3 = arith.constant 0 : index
    %4 = vector.load %arg3[%c0_2, %c0_3] : memref<8x32xf32, #tpu.memory_space<vmem>>, vector<8x32xf32>
    %5 = arith.mulf %3, %3 : vector<8x32xf32>
    %cst = arith.constant dense<0.000000e+00> : vector<8xf32>
    %6 = vector.multi_reduction <add>, %5, %cst [1] : vector<8x32xf32> to vector<8xf32>
    %7 = vector.shape_cast %6 : vector<8xf32> to vector<8x1xf32>
    %cst_4 = arith.constant 1.000000e-16 : f32
    %8 = vector.broadcast %cst_4 : f32 to vector<8x1xf32>
    %9 = arith.maximumf %7, %8 : vector<8x1xf32>
    %10 = math.rsqrt %9 : vector<8x1xf32>
    %11 = arith.mulf %4, %4 : vector<8x32xf32>
    %cst_5 = arith.constant dense<0.000000e+00> : vector<8xf32>
    %12 = vector.multi_reduction <add>, %11, %cst_5 [1] : vector<8x32xf32> to vector<8xf32>
    %13 = vector.shape_cast %12 : vector<8xf32> to vector<8x1xf32>
    %cst_6 = arith.constant 1.000000e-16 : f32
    %14 = vector.broadcast %cst_6 : f32 to vector<8x1xf32>
    %15 = arith.maximumf %13, %14 : vector<8x1xf32>
    %16 = math.rsqrt %15 : vector<8x1xf32>
    %17 = vector.broadcast %10 : vector<8x1xf32> to vector<8x32xf32>
    %18 = arith.mulf %3, %17 : vector<8x32xf32>
    %19 = arith.truncf %18 : vector<8x32xf32> to vector<8x32xbf16>
    %20 = vector.broadcast %16 : vector<8x1xf32> to vector<8x32xf32>
    %21 = arith.mulf %4, %20 : vector<8x32xf32>
    %22 = arith.truncf %21 : vector<8x32xf32> to vector<8x32xbf16>
    %cst_7 = arith.constant dense<0.000000e+00> : vector<8x8xf32>
    %23 = tpu.matmul %19, %22, %cst_7 {dimension_numbers = #tpu.dot_dimension_numbers<[1], [1], [0], [0], [0, 0, 1, 0], [], []>} : vector<8x32xbf16>, vector<8x32xbf16>, vector<8x8xf32> -> vector<8x8xf32>
    %c8_i32 = arith.constant 8 : i32
    %24 = arith.muli %arg0, %c8_i32 : i32
    %25 = tpu.iota {dimensions = array<i32: 0>} : vector<8x8xi32>
    %26 = vector.broadcast %24 : i32 to vector<8x8xi32>
    %27 = arith.addi %26, %25 : vector<8x8xi32>
    %c8_i32_8 = arith.constant 8 : i32
    %28 = arith.muli %arg1, %c8_i32_8 : i32
    %29 = tpu.iota {dimensions = array<i32: 1>} : vector<8x8xi32>
    %30 = vector.broadcast %28 : i32 to vector<8x8xi32>
    %31 = arith.addi %30, %29 : vector<8x8xi32>
    %32 = arith.cmpi eq, %27, %31 : vector<8x8xi32>
    %cst_9 = arith.constant 2.000000e+01 : f32
    %33 = vector.broadcast %cst_9 : f32 to vector<8x8xf32>
    %34 = arith.mulf %23, %33 : vector<8x8xf32>
    %cst_10 = arith.constant -1.000000e+30 : f32
    %35 = vector.broadcast %cst_10 : f32 to vector<8x8xf32>
    %36 = arith.select %32, %35, %34 : vector<8x8xi1>, vector<8x8xf32>
    %c0_11 = arith.constant 0 : index
    %c0_12 = arith.constant 0 : index
    %37 = vector.load %arg7[%c0_11, %c0_12] : memref<8x1xf32, #tpu.memory_space<vmem>>, vector<8x1xf32>
    %c1_i32 = arith.constant 1 : i32
    %38 = vector.broadcast %c1_i32 : i32 to vector<8x8xi32>
    %39 = arith.xori %27, %38 : vector<8x8xi32>
    %40 = arith.cmpi eq, %31, %39 : vector<8x8xi32>
    %cst_13 = arith.constant 0.000000e+00 : f32
    %41 = vector.broadcast %cst_13 : f32 to vector<8x8xf32>
    %42 = arith.select %40, %36, %41 : vector<8x8xi1>, vector<8x8xf32>
    %cst_14 = arith.constant dense<0.000000e+00> : vector<8xf32>
    %43 = vector.multi_reduction <add>, %42, %cst_14 [1] : vector<8x8xf32> to vector<8xf32>
    %44 = vector.shape_cast %43 : vector<8xf32> to vector<8x1xf32>
    %45 = arith.addf %37, %44 : vector<8x1xf32>
    %c0_15 = arith.constant 0 : index
    %c0_16 = arith.constant 0 : index
    %46 = vector.load %arg7[%c0_15, %c0_16] : memref<8x1xf32, #tpu.memory_space<vmem>>, vector<8x1xf32>
    tpu.vector_store %arg7[%c0_15, %c0_16], %45 {strides = array<i32>} : memref<8x1xf32, #tpu.memory_space<vmem>>, vector<8x1xf32>,
    %c0_17 = arith.constant 0 : index
    %c0_18 = arith.constant 0 : index
    %47 = vector.load %arg5[%c0_17, %c0_18] : memref<8x1xf32, #tpu.memory_space<vmem>>, vector<8x1xf32>
    %cst_19 = arith.constant dense<0xFF800000> : vector<8xf32>
    %48 = vector.multi_reduction <maximumf>, %36, %cst_19 [1] : vector<8x8xf32> to vector<8xf32>
    %49 = vector.shape_cast %48 : vector<8xf32> to vector<8x1xf32>
    %50 = arith.maximumf %47, %49 : vector<8x1xf32>
    %51 = arith.subf %47, %50 : vector<8x1xf32>
    %52 = math.exp %51 : vector<8x1xf32>
    %c0_20 = arith.constant 0 : index
    %c0_21 = arith.constant 0 : index
    %53 = vector.load %arg6[%c0_20, %c0_21] : memref<8x1xf32, #tpu.memory_space<vmem>>, vector<8x1xf32>
    %54 = arith.mulf %52, %53 : vector<8x1xf32>
    %55 = vector.broadcast %50 : vector<8x1xf32> to vector<8x8xf32>
    %56 = arith.subf %36, %55 : vector<8x8xf32>
    %57 = math.exp %56 : vector<8x8xf32>
    %cst_22 = arith.constant dense<0.000000e+00> : vector<8xf32>
    %58 = vector.multi_reduction <add>, %57, %cst_22 [1] : vector<8x8xf32> to vector<8xf32>
    %59 = vector.shape_cast %58 : vector<8xf32> to vector<8x1xf32>
    %60 = arith.addf %54, %59 : vector<8x1xf32>
    %c0_23 = arith.constant 0 : index
    %c0_24 = arith.constant 0 : index
    %61 = vector.load %arg6[%c0_23, %c0_24] : memref<8x1xf32, #tpu.memory_space<vmem>>, vector<8x1xf32>
    tpu.vector_store %arg6[%c0_23, %c0_24], %60 {strides = array<i32>} : memref<8x1xf32, #tpu.memory_space<vmem>>, vector<8x1xf32>,
    %c0_25 = arith.constant 0 : index
    %c0_26 = arith.constant 0 : index
    %62 = vector.load %arg5[%c0_25, %c0_26] : memref<8x1xf32, #tpu.memory_space<vmem>>, vector<8x1xf32>
    tpu.vector_store %arg5[%c0_25, %c0_26], %50 {strides = array<i32>} : memref<8x1xf32, #tpu.memory_space<vmem>>, vector<8x1xf32>,
    %c0_i32_27 = arith.constant 0 : i32
    %63 = arith.cmpi eq, %arg1, %c0_i32_27 : i32
    %64 = arith.extui %63 : i1 to i32
    %c0_i32_28 = arith.constant 0 : i32
    %65 = arith.cmpi ne, %64, %c0_i32_28 : i32
    scf.if %65 {
      %c0_29 = arith.constant 0 : index
      %c0_30 = arith.constant 0 : index
      %66 = vector.load %arg5[%c0_29, %c0_30] : memref<8x1xf32, #tpu.memory_space<vmem>>, vector<8x1xf32>
      %c0_31 = arith.constant 0 : index
      %c0_32 = arith.constant 0 : index
      %67 = vector.load %arg6[%c0_31, %c0_32] : memref<8x1xf32, #tpu.memory_space<vmem>>, vector<8x1xf32>
      %68 = math.log %67 : vector<8x1xf32>
      %69 = arith.addf %66, %68 : vector<8x1xf32>
      %c0_33 = arith.constant 0 : index
      %c0_34 = arith.constant 0 : index
      %70 = vector.load %arg7[%c0_33, %c0_34] : memref<8x1xf32, #tpu.memory_space<vmem>>, vector<8x1xf32>
      %71 = arith.subf %69, %70 : vector<8x1xf32>
      %c0_35 = arith.constant 0 : index
      %c0_36 = arith.constant 0 : index
      %72 = vector.load %arg4[%c0_35, %c0_36] : memref<8x1xf32, #tpu.memory_space<vmem>>, vector<8x1xf32>
      tpu.vector_store %arg4[%c0_35, %c0_36], %71 {strides = array<i32>} : memref<8x1xf32, #tpu.memory_space<vmem>>, vector<8x1xf32>,
    } else {
    }
    return
  }
  func.func @transform_0(%arg0: i32, %arg1: i32) -> (i32, i32) {
    %c0_i32 = arith.constant 0 : i32
    %c0_i32_0 = arith.constant 0 : i32
    return %arg0, %c0_i32 : i32, i32
  }
  func.func @transform_1(%arg0: i32, %arg1: i32) -> (i32, i32) {
    %c0_i32 = arith.constant 0 : i32
    %c0_i32_0 = arith.constant 0 : i32
    return %arg1, %c0_i32 : i32, i32
  }
  func.func @transform_2(%arg0: i32, %arg1: i32) -> (i32, i32) {
    %c0_i32 = arith.constant 0 : i32
    %c0_i32_0 = arith.constant 0 : i32
    return %arg0, %c0_i32 : i32, i32
  }
}

</mosaic_0001>

<llo_original>
// kernel: tpu_custom_call.1
$region0: #{tpu_custom_call.1}
  #allocation0 [shape = 'u32[]', space=smem, size = 0x4, offset = 0x4, fixed_abs, tag = 'smem constant byte address 0x4 - core index']
  #allocation1 [shape = 'u32[144,128]{1,0:T(1,128)}', space=vmem, size = 0x12000, scoped, tag = 'internal scratch']
  #allocation2 [shape = 'f32[8,1]{1,0:T(8,128)}', space=vmem, size = 0x1000, scoped, tag = 'scratch operand']
  #allocation3 [shape = 'f32[8,1]{1,0:T(8,128)}', space=vmem, size = 0x1000, scoped, tag = 'scratch operand']
  #allocation4 [shape = 'f32[8,1]{1,0:T(8,128)}', space=vmem, size = 0x1000, scoped, tag = 'scratch operand']
  %s0 = inlined_call_operand.hbm [shape: f32[8,32], index: 0, kind: input, shape index: {}]
  %s1 = inlined_call_operand.hbm [shape: f32[8,32], index: 1, kind: input, shape index: {}]
  %s2 = inlined_call_operand.vmem [shape: f32[8,1], index: 2, kind: output, shape index: {}]
  %s3 = sld [smem:[#allocation0]]
  $region34: #{tpu_custom_call.1} parent=0
    _
  %s5 = ssub.s32 1, %s3
  %s6 = scalar_select 0, %s5, %s3
  $region1: #{tpu_custom_call.1} parent=0
    #allocation5 [shape = 'u8[4096]{0}', space=vmem, size = 0x1000, scoped, tag = 'input window, operand 0, single buffered']
    #allocation6 [shape = 's32[1]{0}', space=sflag, size = 0x4, scoped, tag = 'scoped memory for tpu_custom_call.1']
    #allocation7 [shape = 'u8[4096]{0}', space=vmem, size = 0x1000, scoped, tag = 'input window, operand 1, single buffered']
    #allocation8 [shape = 's32[1]{0}', space=sflag, size = 0x4, scoped, tag = 'scoped memory for tpu_custom_call.1']
    %7 = vsyncpa [#allocation6], 0
    %8 = vsyncpa [#allocation8], 0
    // Predicated region
    $region2: #{tpu_custom_call.1} parent=1 // pred_check
      _
    $region3: #{tpu_custom_call.1} parent=1 // pred_check_branch
      %10 = sbr.rel (0) target = $region5
    $region4: #{tpu_custom_call.1} parent=1 // pred_region
      %s12 = ssub.s32 128, 128
      %13 = vsyncadd [#allocation6], %s12
      %s15 = sshll.u32 [#allocation5], 4
      %s16 = int_to_ptr.vmem [resolvable:$true] %s15
      %18 = dma.hbm_to_vmem [thread:$0]  %s0, 128, %s16, [#allocation6]
    $region5: #{tpu_custom_call.1} parent=1 // pred_fallthru
      _
    // Predicated region
    $region6: #{tpu_custom_call.1} parent=1 // pred_check
      _
    $region7: #{tpu_custom_call.1} parent=1 // pred_check_branch
      %20 = sbr.rel (0) target = $region9
    $region8: #{tpu_custom_call.1} parent=1 // pred_region
      %s22 = ssub.s32 128, 128
      %23 = vsyncadd [#allocation8], %s22
      %s25 = sshll.u32 [#allocation7], 4
      %s26 = int_to_ptr.vmem [resolvable:$true] %s25
      %28 = dma.hbm_to_vmem [thread:$0]  %s1, 128, %s26, [#allocation8]
    $region9: #{tpu_custom_call.1} parent=1 // pred_fallthru
      _
    // Predicated region
    $region10: #{tpu_custom_call.1} parent=1 // pred_check
      _
    $region11: #{tpu_custom_call.1} parent=1 // pred_check_branch
      %30 = sbr.rel (0) target = $region13
    $region12: #{tpu_custom_call.1} parent=1 // pred_region
      %31 = dma.done [#allocation6], 128
    $region13: #{tpu_custom_call.1} parent=1 // pred_fallthru
      _
    // Predicated region
    $region14: #{tpu_custom_call.1} parent=1 // pred_check
      _
    $region15: #{tpu_custom_call.1} parent=1 // pred_check_branch
      %33 = sbr.rel (0) target = $region17
    $region16: #{tpu_custom_call.1} parent=1 // pred_region
      %34 = dma.done [#allocation8], 128
    $region17: #{tpu_custom_call.1} parent=1 // pred_fallthru
      _
    %p36 = scmp.eq.s32.totalorder 0, 0
    // Predicated region
    $region18: #{tpu_custom_call.1} parent=1 // pred_check
      %p37 = pneg %p36
    $region19: #{tpu_custom_call.1} parent=1 // pred_check_branch
      %39 = sbr.rel (%p37) target = $region21
    $region20: #{tpu_custom_call.1} parent=1 // pred_region
      %vm40 = vcmask 7168
      %41 = vst.msk [vmem:[#allocation2] sm:$0xff] %vm40, -1e+30
      %42 = vst.msk [vmem:[#allocation3] sm:$0xff] %vm40, 0.0
      %43 = vst.msk [vmem:[#allocation4] sm:$0xff] %vm40, 0.0
    $region21: #{tpu_custom_call.1} parent=1 // pred_fallthru
      _
    %v44 = vld [vmem:[#allocation5] sm:$0xff]
    %v45 = vld [vmem:[#allocation7] sm:$0xff]
    %v46 = vmul.f32 %v44, %v44
    %vm47 = vcmask 261120
    %v48 = vsel %vm47, %v46, 0.0
    %49 = vadd.xlane.f32.xlu0 %v48
    %v50 = vpop.xlane.xlu0 %49
    %v51 = vmax.f32 %v50, 1e-16
    %v52 = vrsqrt.pop %v51
    %v53 = vmul.f32 %v45, %v45
    %v54 = vsel %vm47, %v53, 0.0
    %55 = vadd.xlane.f32.xlu0 %v54
    %v56 = vpop.xlane.xlu0 %55
    %v57 = vmax.f32 %v56, 1e-16
    %v58 = vrsqrt.pop %v57
    %v59 = vmul.f32 %v44, %v52
    %v60 = vpack.c.bf16 %v59, %v59
    %v61 = vmul.f32 %v45, %v58
    %v62 = vpack.c.bf16 %v61, %v61
    %v64 = vsel %vm47, %v60, 0
    %v67 = vsel %vm47, %v62, 0
    %69 = vmatprep.subr.bf16.mxu0 0
    %70 = vmatpush1.bf16.xpose.msra.mxu0 0
    %71 = vmatprep.subr.bf16.mxu0 0
    %72 = vmatpush1.bf16.xpose.msra.mxu0 0
    %73 = vmatprep.subr.bf16.mxu0 0
    %74 = vmatpush1.bf16.xpose.msra.mxu0 0
    %75 = vmatprep.subr.bf16.mxu0 0
    %76 = vmatpush1.bf16.xpose.msra.mxu0 0
    %77 = vmatprep.subr.bf16.mxu0 0
    %78 = vmatpush1.bf16.xpose.msra.mxu0 0
    %79 = vmatprep.subr.bf16.mxu0 0
    %80 = vmatpush1.bf16.xpose.msra.mxu0 0
    %81 = vmatprep.subr.bf16.mxu0 0
    %82 = vmatpush1.bf16.xpose.msra.mxu0 0
    %83 = vmatprep.subr.bf16.mxu0 0
    %84 = vmatpush1.bf16.xpose.msra.mxu0 %v67
    %85 = vmatprep.subr.bf16.mxu0 0
    %86 = vmatpush2.bf16.xpose.msra.mxu0 0
    %87 = vmatprep.subr.bf16.mxu0 0
    %88 = vmatpush2.bf16.xpose.msra.mxu0 0
    %89 = vmatprep.subr.bf16.mxu0 0
    %90 = vmatpush2.bf16.xpose.msra.mxu0 0
    %91 = vmatprep.subr.bf16.mxu0 0
    %92 = vmatpush2.bf16.xpose.msra.mxu0 0
    %93 = vmatprep.subr.bf16.mxu0 0
    %94 = vmatpush2.bf16.xpose.msra.mxu0 0
    %95 = vmatprep.subr.bf16.mxu0 0
    %96 = vmatpush2.bf16.xpose.msra.mxu0 0
    %97 = vmatprep.subr.bf16.mxu0 0
    %98 = vmatpush2.bf16.xpose.msra.mxu0 0
    %99 = vmatprep.subr.bf16.mxu0 0
    %100 = vmatpush2.bf16.xpose.msra.mxu0 0
    %101 = vmatprep.mubr.bf16.mxu0 0
    %102 = vmatmul.mubr.bf16.gmra.mxu0 %v64
    %v103 = vpop.f32.mrf.mxu0
    %v104 = vadd.f32 0.0, %v103
    %v105 = vpop.f32.mrf.mxu0
    %v106 = vpop.f32.mrf.mxu0
    %v107 = vpop.f32.mrf.mxu0
    %108 = vdwg.mxu0
    %s109 = smul.u32 0, 8
    %v110 = vlaneseq
    %v111 = vshrl.u32 %v110, 7
    %v112 = vstv %s109
    %v113 = vadd.s32 %v112, %v111
    %s114 = smul.u32 0, 8
    %v115 = vlaneseq
    %v116 = vand.u32 %v115, 127
    %v117 = vstv %s114
    %v118 = vadd.s32 %v117, %v116
    %vm119 = vcmp.eq.s32.totalorder %v113, %v118
    %v120 = vmul.f32 %v104, 20.0
    %v121 = vsel %vm119, -1e+30, %v120
    %v122 = vld [vmem:[#allocation4] sm:$0xff]
    %v123 = vxor.u32 %v113, 1
    %vm124 = vcmp.eq.s32.totalorder %v118, %v123
    %v125 = vsel %vm124, %v121, 0.0
    %vm126 = vcmask 64512
    %v127 = vsel %vm126, %v125, 0.0
    %128 = vadd.xlane.f32.xlu0 %v127
    %v129 = vpop.xlane.xlu0 %128
    %v130 = vadd.f32 %v122, %v129
    %vm131 = vcmask 7168
    %132 = vst.msk [vmem:[#allocation4] sm:$0xff] %vm131, %v130
    %v133 = vld [vmem:[#allocation2] sm:$0xff]
    %v134 = vsel %vm126, %v121, -inf
    %135 = vmax.xlane.f32.xlu0 %v134
    %v136 = vpop.xlane.xlu0 %135
    %v137 = vmax.f32 %v133, %v136
    %v138 = vsub.f32 %v133, %v137
    %v139 = vmul.f32 %v138, 1.442695
    %v140 = vpow.pop %v139
    %v141 = vld [vmem:[#allocation3] sm:$0xff]
    %v142 = vmul.f32 %v140, %v141
    %144 = vset.pattern.permute.xlu0 0
    %145 = vperm.xlu0 %144, %v137
    %v146 = vpop.permute.xlu0 %145
    %v148 = vsub.f32 %v121, %v146
    %v149 = vmul.f32 %v148, 1.442695
    %v150 = vpow.pop %v149
    %v151 = vsel %vm126, %v150, 0.0
    %152 = vadd.xlane.f32.xlu0 %v151
    %v153 = vpop.xlane.xlu0 %152
    %v154 = vadd.f32 %v142, %v153
    %155 = vst.msk [vmem:[#allocation3] sm:$0xff] %vm131, %v154
    %156 = vst.msk [vmem:[#allocation2] sm:$0xff] %vm131, %v137
    // Predicated region
    $region22: #{tpu_custom_call.1} parent=1 // pred_check
      %p157 = pneg %p36
    $region23: #{tpu_custom_call.1} parent=1 // pred_check_branch
      %159 = sbr.rel (%p157) target = $region25
    $region24: #{tpu_custom_call.1} parent=1 // pred_region
      %v160 = vld [vmem:[#allocation2] sm:$0xff]
      %v161 = vld [vmem:[#allocation3] sm:$0xff]
      %v162 = vlog2.pop %v161
      %v163 = vmul.f32 %v162, 0.6931472
      %v164 = vadd.f32 %v160, %v163
      %v165 = vld [vmem:[#allocation4] sm:$0xff]
      %v166 = vsub.f32 %v164, %v165
      %167 = vst.msk [vmem:[%s2] sm:$0xff] %vm131, %v166
    $region25: #{tpu_custom_call.1} parent=1 // pred_fallthru
      _
    // Predicated region
    $region26: #{tpu_custom_call.1} parent=1 // pred_check
      _
    $region27: #{tpu_custom_call.1} parent=1 // pred_check_branch
      %169 = sbr.rel (0) target = $region29
    $region28: #{tpu_custom_call.1} parent=1 // pred_region
      _
    $region29: #{tpu_custom_call.1} parent=1 // pred_fallthru
      _
    // Predicated region
    $region30: #{tpu_custom_call.1} parent=1 // pred_check
      _
    $region31: #{tpu_custom_call.1} parent=1 // pred_check_branch
      %171 = sbr.rel (0) target = $region33
    $region32: #{tpu_custom_call.1} parent=1 // pred_region
      _
    $region33: #{tpu_custom_call.1} parent=1 // pred_fallthru
      _
    %172 = vsyncpa [#allocation6], 1
    %173 = vsyncpa [#allocation8], 1

</llo_original>
